<compile_context>
chip_gen: v5e
topology: v5e:2x2
jax: 0.10.0
libtpu: 0.0.40
codegen_flags: <defaults>
</compile_context>

<pallas_src>
import functools

import jax
import jax.numpy as jnp
from jax.experimental import pallas as pl
from jax.experimental.pallas import tpu as pltpu

_LANE = 128      # vreg lane width / MXU-friendly feature padding
_SUBLANE = 8     # f32 sublane group (bf16 packs 2 rows per sublane -> 16)


def _round_up(x, m):
    return (x + m - 1) // m * m


def _fused_mlp_kernel(x_ref, *refs, activations):
    """One batch tile of the full MLP: x -> L1 -> act1 -> ... -> Ln -> actn."""
    *param_refs, o_ref = refs
    h = x_ref[...].astype(jnp.float32)
    for i, act in enumerate(activations):
        w = param_refs[2 * i][...]          # (in_i, pad_out_i), VMEM-resident, bf16
        b = param_refs[2 * i + 1][...]      # (1, pad_out_i) f32 -> broadcasts over batch
        # bf16 operands, f32 accumulation -> full-rate MXU on v6e/v7x.
        h = jnp.dot(h.astype(w.dtype), w, preferred_element_type=jnp.float32) + b
        if act == "relu":
            h = jnp.maximum(h, 0.0)
        elif act == "tanh":
            h = jnp.tanh(h)
        elif act == "identity":
            pass
        else:
            raise ValueError(f"unsupported activation: {act}")
    o_ref[...] = h.astype(o_ref.dtype)


def prepare_params(params, *, weight_dtype=jnp.bfloat16):
    """Pad each (W, b) to lane-dense output dims; store W in `weight_dtype`.

    The FIRST layer keeps its true input dim (no lane padding of the input is
    needed — the kernel contracts over the raw state_size).  Later layers pad
    their input dim to 128 to match the previous layer's padded output.  Do
    this ONCE per set of weights (hoisted out of the per-forward path).
    """
    padded = []
    for li, (w, b) in enumerate(params):
        in_f, out_f = w.shape
        pin = in_f if li == 0 else _round_up(in_f, _LANE)
        pout = _round_up(out_f, _LANE)
        w_p = jnp.zeros((pin, pout), weight_dtype).at[:in_f, :out_f].set(
            w.astype(weight_dtype))
        b_p = jnp.zeros((1, pout), jnp.float32).at[0, :out_f].set(
            b.astype(jnp.float32))
        padded.append((w_p, b_p))
    return padded


def fused_forward(state, padded_params, *, activations, out_features,
                  block_batch=512):
    """Equivalent of Network.forward, as one fused Pallas kernel call."""
    batch, in_f = state.shape
    pout = padded_params[-1][0].shape[1]
    w_itemsize = jnp.dtype(padded_params[0][0].dtype).itemsize
    # Sublane alignment of the batch tile: 8 for 32-bit operands, 16 for 16-bit
    # (bf16 packs two rows per sublane).
    sub = _SUBLANE * (4 // max(w_itemsize, 1)) if w_itemsize < 4 else _SUBLANE

    # --- Batch tiling: minimize padding, keep both v7x TensorCores busy. ---
    n_tiles = pl.cdiv(batch, block_batch)
    if batch >= 2 * sub:
        n_tiles = max(n_tiles, 2)          # grid=(>=2,) so megacore can split it
        n_tiles = _round_up(n_tiles, 2)
    bb = _round_up(pl.cdiv(batch, n_tiles), sub)
    padded_batch = n_tiles * bb

    # Only batch-row padding (no 8x-wide lane-padded HBM copy of the input).
    x = state
    if padded_batch != batch:
        x = jnp.zeros((padded_batch, in_f), state.dtype).at[:batch].set(state)

    flat_params = []
    # Last dim of the input block equals the full array dim (legal even if <128).
    in_specs = [pl.BlockSpec((bb, in_f), lambda i: (i, 0))]
    for w_p, b_p in padded_params:
        flat_params.append(w_p)
        in_specs.append(pl.BlockSpec(w_p.shape, lambda i: (0, 0)))  # VMEM-resident
        flat_params.append(b_p)
        in_specs.append(pl.BlockSpec(b_p.shape, lambda i: (0, 0)))

    # Advisory cost estimate so XLA schedules surrounding ops around the call.
    flops = 0
    transcendentals = 0
    bytes_accessed = (x.size * x.dtype.itemsize
                      + padded_batch * pout * state.dtype.itemsize)
    for (w_p, b_p), act in zip(padded_params, activations):
        k, n = w_p.shape
        flops += 2 * padded_batch * k * n
        bytes_accessed += (w_p.size * jnp.dtype(w_p.dtype).itemsize
                           + b_p.size * jnp.dtype(b_p.dtype).itemsize)
        if act == "tanh":
            transcendentals += padded_batch * n
    cost = pl.CostEstimate(flops=flops, transcendentals=transcendentals,
                           bytes_accessed=bytes_accessed)

    kernel = functools.partial(_fused_mlp_kernel, activations=tuple(activations))
    out_padded = pl.pallas_call(
        kernel,
        out_shape=jax.ShapeDtypeStruct((padded_batch, pout), state.dtype),
        grid=(n_tiles,),
        in_specs=in_specs,
        out_specs=pl.BlockSpec((bb, pout), lambda i: (i, 0)),
        compiler_params=pltpu.CompilerParams(
            dimension_semantics=("parallel",),
            vmem_limit_bytes=32 * 1024 * 1024,
        ),
        cost_estimate=cost,
    )(x, *flat_params)

    # Slice real batch rows and real action columns outside the kernel
    # (keeps the in-kernel store lane-dense / unmasked).
    return out_padded[:batch, :out_features]


def init_params(key, layer_sizes):
    """Deterministic init for a stack of Linear layers.

    Returns list of (W, b) with W of shape (in, out) (transposed vs PyTorch).
    """
    params = []
    for in_f, out_f in zip(layer_sizes[:-1], layer_sizes[1:]):
        key, kw, kb = jax.random.split(key, 3)
        bound = 1.0 / jnp.sqrt(in_f)
        w = jax.random.uniform(kw, (in_f, out_f), jnp.float32, -bound, bound)
        b = jax.random.uniform(kb, (out_f,), jnp.float32, -bound, bound)
        params.append((w, b))
    return params


def _reference_forward(state, params, activations, weight_dtype=jnp.bfloat16):
    """Pure-JAX reference with the same bf16-operand / f32-accumulate recipe."""
    out = state.astype(jnp.float32)
    for (w, b), act in zip(params, activations):
        out = jnp.dot(out.astype(weight_dtype), w.astype(weight_dtype),
                      preferred_element_type=jnp.float32) + b.astype(jnp.float32)
        if act == "relu":
            out = jnp.maximum(out, 0.0)
        elif act == "tanh":
            out = jnp.tanh(out)
    return out


if __name__ == "__main__":
    # Small DQN-style MLP: state_size=16 -> 32 -> 32 -> n_actions=4
    state_size = 16
    n_actions = 4
    hidden = 32
    batch = 8

    key = jax.random.PRNGKey(0)
    key, kx = jax.random.split(key)
    state = jax.random.normal(kx, (batch, state_size), jnp.float32)

    params = init_params(key, [state_size, hidden, hidden, n_actions])
    activations = ("relu", "relu", "identity")

    padded_params = prepare_params(params)  # hoisted out of the forward path
    forward = jax.jit(functools.partial(
        fused_forward, activations=activations, out_features=n_actions))

    q_values = forward(state, padded_params)
    jax.block_until_ready(q_values)

    ref = _reference_forward(state, params, activations)
    assert q_values.shape == (batch, n_actions)
    assert jnp.allclose(q_values, ref, atol=2e-3, rtol=2e-3)

    # Second check: larger batch (forces >=2 tiles for megacore, uneven
    # padding 300 -> 320) + tanh path.
    key, kx2 = jax.random.split(key)
    big_state = jax.random.normal(kx2, (300, state_size), jnp.float32)
    acts2 = ("relu", "tanh", "identity")
    forward2 = jax.jit(functools.partial(
        fused_forward, activations=acts2, out_features=n_actions))
    q2 = forward2(big_state, padded_params)
    jax.block_until_ready(q2)
    ref2 = _reference_forward(big_state, params, acts2)
    assert q2.shape == (300, n_actions)
    assert jnp.allclose(q2, ref2, atol=2e-3, rtol=2e-3)

    print("KERNEL_OK")
</pallas_src>

<mosaic_0001>
module attributes {stable_mosaic.version = 11 : i64} {
  func.func @_fused_mlp_kernel(%arg0: i32, %arg1: memref<16x16xf32, #tpu.memory_space<vmem>>, %arg2: memref<16x128xbf16, #tpu.memory_space<vmem>>, %arg3: memref<1x128xf32, #tpu.memory_space<vmem>>, %arg4: memref<128x128xbf16, #tpu.memory_space<vmem>>, %arg5: memref<1x128xf32, #tpu.memory_space<vmem>>, %arg6: memref<128x128xbf16, #tpu.memory_space<vmem>>, %arg7: memref<1x128xf32, #tpu.memory_space<vmem>>, %arg8: memref<16x128xf32, #tpu.memory_space<vmem>>) attributes {dimension_semantics = [#tpu.dimension_semantics<parallel>], iteration_bounds = array<i64: 1>, scalar_prefetch = 0 : i64, scratch_operands = 0 : i64, tpu.core_type = #tpu.core_type<tc>, window_params = [{transform_indices = @transform_0, window_bounds = array<i64: 16, 16>}, {pipeline_mode = #tpu.pipeline_mode<synchronous>, transform_indices = @transform_1, window_bounds = array<i64: 16, 128>}, {pipeline_mode = #tpu.pipeline_mode<synchronous>, transform_indices = @transform_2, window_bounds = array<i64: 1, 128>}, {pipeline_mode = #tpu.pipeline_mode<synchronous>, transform_indices = @transform_3, window_bounds = array<i64: 128, 128>}, {pipeline_mode = #tpu.pipeline_mode<synchronous>, transform_indices = @transform_4, window_bounds = array<i64: 1, 128>}, {pipeline_mode = #tpu.pipeline_mode<synchronous>, transform_indices = @transform_5, window_bounds = array<i64: 128, 128>}, {pipeline_mode = #tpu.pipeline_mode<synchronous>, transform_indices = @transform_6, window_bounds = array<i64: 1, 128>}, {transform_indices = @transform_7, window_bounds = array<i64: 16, 128>}]} {
    %c0 = arith.constant 0 : index
    %c0_0 = arith.constant 0 : index
    %0 = vector.load %arg1[%c0, %c0_0] : memref<16x16xf32, #tpu.memory_space<vmem>>, vector<16x16xf32>
    %c0_1 = arith.constant 0 : index
    %c0_2 = arith.constant 0 : index
    %1 = vector.load %arg2[%c0_1, %c0_2] : memref<16x128xbf16, #tpu.memory_space<vmem>>, vector<16x128xbf16>
    %c0_3 = arith.constant 0 : index
    %c0_4 = arith.constant 0 : index
    %2 = vector.load %arg3[%c0_3, %c0_4] : memref<1x128xf32, #tpu.memory_space<vmem>>, vector<1x128xf32>
    %3 = arith.truncf %0 : vector<16x16xf32> to vector<16x16xbf16>
    %cst = arith.constant dense<0.000000e+00> : vector<16x128xf32>
    %4 = tpu.matmul %3, %1, %cst {dimension_numbers = #tpu.dot_dimension_numbers<[1], [0], [0], [1], [0, 0, 1, 1], [], []>} : vector<16x16xbf16>, vector<16x128xbf16>, vector<16x128xf32> -> vector<16x128xf32>
    %5 = vector.broadcast %2 : vector<1x128xf32> to vector<16x128xf32>
    %6 = arith.addf %4, %5 : vector<16x128xf32>
    %cst_5 = arith.constant 0.000000e+00 : f32
    %7 = vector.broadcast %cst_5 : f32 to vector<16x128xf32>
    %8 = arith.maximumf %6, %7 : vector<16x128xf32>
    %c0_6 = arith.constant 0 : index
    %c0_7 = arith.constant 0 : index
    %9 = vector.load %arg4[%c0_6, %c0_7] : memref<128x128xbf16, #tpu.memory_space<vmem>>, vector<128x128xbf16>
    %c0_8 = arith.constant 0 : index
    %c0_9 = arith.constant 0 : index
    %10 = vector.load %arg5[%c0_8, %c0_9] : memref<1x128xf32, #tpu.memory_space<vmem>>, vector<1x128xf32>
    %11 = arith.truncf %8 : vector<16x128xf32> to vector<16x128xbf16>
    %cst_10 = arith.constant dense<0.000000e+00> : vector<16x128xf32>
    %12 = tpu.matmul %11, %9, %cst_10 {dimension_numbers = #tpu.dot_dimension_numbers<[1], [0], [0], [1], [0, 0, 1, 1], [], []>} : vector<16x128xbf16>, vector<128x128xbf16>, vector<16x128xf32> -> vector<16x128xf32>
    %13 = vector.broadcast %10 : vector<1x128xf32> to vector<16x128xf32>
    %14 = arith.addf %12, %13 : vector<16x128xf32>
    %cst_11 = arith.constant 0.000000e+00 : f32
    %15 = vector.broadcast %cst_11 : f32 to vector<16x128xf32>
    %16 = arith.maximumf %14, %15 : vector<16x128xf32>
    %c0_12 = arith.constant 0 : index
    %c0_13 = arith.constant 0 : index
    %17 = vector.load %arg6[%c0_12, %c0_13] : memref<128x128xbf16, #tpu.memory_space<vmem>>, vector<128x128xbf16>
    %c0_14 = arith.constant 0 : index
    %c0_15 = arith.constant 0 : index
    %18 = vector.load %arg7[%c0_14, %c0_15] : memref<1x128xf32, #tpu.memory_space<vmem>>, vector<1x128xf32>
    %19 = arith.truncf %16 : vector<16x128xf32> to vector<16x128xbf16>
    %cst_16 = arith.constant dense<0.000000e+00> : vector<16x128xf32>
    %20 = tpu.matmul %19, %17, %cst_16 {dimension_numbers = #tpu.dot_dimension_numbers<[1], [0], [0], [1], [0, 0, 1, 1], [], []>} : vector<16x128xbf16>, vector<128x128xbf16>, vector<16x128xf32> -> vector<16x128xf32>
    %21 = vector.broadcast %18 : vector<1x128xf32> to vector<16x128xf32>
    %22 = arith.addf %20, %21 : vector<16x128xf32>
    %c0_17 = arith.constant 0 : index
    %c0_18 = arith.constant 0 : index
    %23 = vector.load %arg8[%c0_17, %c0_18] : memref<16x128xf32, #tpu.memory_space<vmem>>, vector<16x128xf32>
    tpu.vector_store %arg8[%c0_17, %c0_18], %22 {strides = array<i32>} : memref<16x128xf32, #tpu.memory_space<vmem>>, vector<16x128xf32>,
    return
  }
  func.func @transform_0(%arg0: i32) -> (i32, i32) {
    %c0_i32 = arith.constant 0 : i32
    %c0_i32_0 = arith.constant 0 : i32
    return %arg0, %c0_i32 : i32, i32
  }
  func.func @transform_1(%arg0: i32) -> (i32, i32) {
    %c0_i32 = arith.constant 0 : i32
    %c0_i32_0 = arith.constant 0 : i32
    %c0_i32_1 = arith.constant 0 : i32
    return %c0_i32, %c0_i32_0 : i32, i32
  }
  func.func @transform_2(%arg0: i32) -> (i32, i32) {
    %c0_i32 = arith.constant 0 : i32
    %c0_i32_0 = arith.constant 0 : i32
    %c0_i32_1 = arith.constant 0 : i32
    return %c0_i32, %c0_i32_0 : i32, i32
  }
  func.func @transform_3(%arg0: i32) -> (i32, i32) {
    %c0_i32 = arith.constant 0 : i32
    %c0_i32_0 = arith.constant 0 : i32
    %c0_i32_1 = arith.constant 0 : i32
    return %c0_i32, %c0_i32_0 : i32, i32
  }
  func.func @transform_4(%arg0: i32) -> (i32, i32) {
    %c0_i32 = arith.constant 0 : i32
    %c0_i32_0 = arith.constant 0 : i32
    %c0_i32_1 = arith.constant 0 : i32
    return %c0_i32, %c0_i32_0 : i32, i32
  }
  func.func @transform_5(%arg0: i32) -> (i32, i32) {
    %c0_i32 = arith.constant 0 : i32
    %c0_i32_0 = arith.constant 0 : i32
    %c0_i32_1 = arith.constant 0 : i32
    return %c0_i32, %c0_i32_0 : i32, i32
  }
  func.func @transform_6(%arg0: i32) -> (i32, i32) {
    %c0_i32 = arith.constant 0 : i32
    %c0_i32_0 = arith.constant 0 : i32
    %c0_i32_1 = arith.constant 0 : i32
    return %c0_i32, %c0_i32_0 : i32, i32
  }
  func.func @transform_7(%arg0: i32) -> (i32, i32) {
    %c0_i32 = arith.constant 0 : i32
    %c0_i32_0 = arith.constant 0 : i32
    return %arg0, %c0_i32 : i32, i32
  }
}

</mosaic_0001>

<llo_original>
// kernel: fused_forward.1
$region0: #{fused_forward.1}
  #allocation0 [shape = 'u32[]', space=smem, size = 0x4, offset = 0x4, fixed_abs, tag = 'smem constant byte address 0x4 - core index']
  #allocation1 [shape = 'u32[72,128]{1,0:T(1,128)}', space=vmem, size = 0x9000, scoped, tag = 'internal scratch']
  %s0 = inlined_call_operand.vmem [shape: f32[16,16], index: 0, kind: input, shape index: {}]
  %s1 = inlined_call_operand.vmem [shape: bf16[16,128], index: 1, kind: input, shape index: {}]
  %s2 = inlined_call_operand.vmem [shape: f32[1,128], index: 2, kind: input, shape index: {}]
  %s3 = inlined_call_operand.hbm [shape: bf16[128,128], index: 3, kind: input, shape index: {}]
  %s4 = inlined_call_operand.vmem [shape: f32[1,128], index: 4, kind: input, shape index: {}]
  %s5 = inlined_call_operand.hbm [shape: bf16[128,128], index: 5, kind: input, shape index: {}]
  %s6 = inlined_call_operand.vmem [shape: f32[1,128], index: 6, kind: input, shape index: {}]
  %s7 = inlined_call_operand.vmem [shape: f32[16,128], index: 7, kind: output, shape index: {}]
  %s8 = sld [smem:[#allocation0]]
  $region46: #{fused_forward.1} parent=0
    _
  %s10 = ssub.s32 1, %s8
  %s11 = scalar_select 0, %s10, %s8
  $region1: #{fused_forward.1} parent=0
    #allocation2 [shape = 'u8[32768]{0}', space=vmem, size = 0x8000, scoped, tag = 'input window, operand 3, single buffered']
    #allocation3 [shape = 's32[1]{0}', space=sflag, size = 0x4, scoped, tag = 'scoped memory for fused_forward.1']
    #allocation4 [shape = 'u8[32768]{0}', space=vmem, size = 0x8000, scoped, tag = 'input window, operand 5, single buffered']
    #allocation5 [shape = 's32[1]{0}', space=sflag, size = 0x4, scoped, tag = 'scoped memory for fused_forward.1']
    %12 = vsyncpa [#allocation3], 0
    %13 = vsyncpa [#allocation5], 0
    // Predicated region
    $region2: #{fused_forward.1} parent=1 // pred_check
      _
    $region3: #{fused_forward.1} parent=1 // pred_check_branch
      %15 = sbr.rel (0) target = $region5
    $region4: #{fused_forward.1} parent=1 // pred_region
      _
    $region5: #{fused_forward.1} parent=1 // pred_fallthru
      _
    // Predicated region
    $region6: #{fused_forward.1} parent=1 // pred_check
      _
    $region7: #{fused_forward.1} parent=1 // pred_check_branch
      %17 = sbr.rel (0) target = $region9
    $region8: #{fused_forward.1} parent=1 // pred_region
      _
    $region9: #{fused_forward.1} parent=1 // pred_fallthru
      _
    // Predicated region
    $region10: #{fused_forward.1} parent=1 // pred_check
      _
    $region11: #{fused_forward.1} parent=1 // pred_check_branch
      %19 = sbr.rel (0) target = $region13
    $region12: #{fused_forward.1} parent=1 // pred_region
      _
    $region13: #{fused_forward.1} parent=1 // pred_fallthru
      _
    // Predicated region
    $region14: #{fused_forward.1} parent=1 // pred_check
      _
    $region15: #{fused_forward.1} parent=1 // pred_check_branch
      %21 = sbr.rel (0) target = $region17
    $region16: #{fused_forward.1} parent=1 // pred_region
      %23 = vsyncadd [#allocation3], 0
      %s24 = sshll.u32 %s3, 4
      %s25 = int_to_ptr.hbm [resolvable:$true] %s24
      %s26 = sshll.u32 [#allocation2], 4
      %s27 = int_to_ptr.vmem [resolvable:$true] %s26
      %32 = dma.hbm_to_vmem [thread:$0]  %s25, 1024, %s27, [#allocation3], 64, 64, 4
    $region17: #{fused_forward.1} parent=1 // pred_fallthru
      _
    // Predicated region
    $region18: #{fused_forward.1} parent=1 // pred_check
      _
    $region19: #{fused_forward.1} parent=1 // pred_check_branch
      %34 = sbr.rel (0) target = $region21
    $region20: #{fused_forward.1} parent=1 // pred_region
      _
    $region21: #{fused_forward.1} parent=1 // pred_fallthru
      _
    // Predicated region
    $region22: #{fused_forward.1} parent=1 // pred_check
      _
    $region23: #{fused_forward.1} parent=1 // pred_check_branch
      %36 = sbr.rel (0) target = $region25
    $region24: #{fused_forward.1} parent=1 // pred_region
      %38 = vsyncadd [#allocation5], 0
      %s39 = sshll.u32 %s5, 4
      %s40 = int_to_ptr.hbm [resolvable:$true] %s39
      %s41 = sshll.u32 [#allocation4], 4
      %s42 = int_to_ptr.vmem [resolvable:$true] %s41
      %47 = dma.hbm_to_vmem [thread:$0]  %s40, 1024, %s42, [#allocation5], 64, 64, 4
    $region25: #{fused_forward.1} parent=1 // pred_fallthru
      _
    // Predicated region
    $region26: #{fused_forward.1} parent=1 // pred_check
      _
    $region27: #{fused_forward.1} parent=1 // pred_check_branch
      %49 = sbr.rel (0) target = $region29
    $region28: #{fused_forward.1} parent=1 // pred_region
      _
    $region29: #{fused_forward.1} parent=1 // pred_fallthru
      _
    // Predicated region
    $region30: #{fused_forward.1} parent=1 // pred_check
      _
    $region31: #{fused_forward.1} parent=1 // pred_check_branch
      %51 = sbr.rel (0) target = $region33
    $region32: #{fused_forward.1} parent=1 // pred_region
      %53 = dma.done [#allocation3], 1024
    $region33: #{fused_forward.1} parent=1 // pred_fallthru
      _
    // Predicated region
    $region34: #{fused_forward.1} parent=1 // pred_check
      _
    $region35: #{fused_forward.1} parent=1 // pred_check_branch
      %55 = sbr.rel (0) target = $region37
    $region36: #{fused_forward.1} parent=1 // pred_region
      %57 = dma.done [#allocation5], 1024
    $region37: #{fused_forward.1} parent=1 // pred_fallthru
      _
    %v59 = vld [vmem:[%s0] sm:$0xff]
    %v60 = vld [vmem:[%s0 + $0x8] sm:$0xff]
    %v61 = vld [vmem:[%s1] sm:$0xf]
    %v62 = vld [vmem:[%s1 + $0x4] sm:$0xf]
    %v63 = vld [vmem:[%s2] sm:$0x1]
    %v64 = vpack.c.bf16 %v60, %v59
    %v66 = vperm.slane %v63, 0
    %v70 = vunpack.c.l.b16 %v61
    %v71 = vunpack.c.l.b16 %v62
    %v72 = vpack.c.b16 %v71, %v70
    %vm74 = vcmask 130048
    %v76 = vsel %vm74, %v64, 0
    %78 = vmatpush.bf16.msra.mxu0 0
    %79 = vmatpush.bf16.msra.mxu0 0
    %80 = vmatpush.bf16.msra.mxu0 0
    %81 = vmatpush.bf16.msra.mxu0 0
    %82 = vmatpush.bf16.msra.mxu0 0
    %83 = vmatpush.bf16.msra.mxu0 0
    %84 = vmatpush.bf16.msra.mxu0 0
    %85 = vmatpush.bf16.msra.mxu0 %v72
    %86 = vmatmul.bf16.gmra.mxu0 %v76
    %v87 = vpop.f32.mrf.mxu0
    %v88 = vadd.f32 %v66, %v87
    %v89 = vpop.f32.mrf.mxu0
    %v90 = vadd.f32 %v66, %v89
    %91 = vdwg.mxu0
    %v92 = vmax.f32 %v88, 0.0
    %v93 = vmax.f32 %v90, 0.0
    %v94 = vld [vmem:[#allocation2] sm:$0xf]
    %v95 = vld [vmem:[#allocation2 + $0x4] sm:$0xf]
    %v96 = vld [vmem:[#allocation2 + $0x8] sm:$0xf]
    %v97 = vld [vmem:[#allocation2 + $0xc] sm:$0xf]
    %v98 = vld [vmem:[#allocation2 + $0x10] sm:$0xf]
    %v99 = vld [vmem:[#allocation2 + $0x14] sm:$0xf]
    %v100 = vld [vmem:[#allocation2 + $0x18] sm:$0xf]
    %v101 = vld [vmem:[#allocation2 + $0x1c] sm:$0xf]
    %v102 = vld [vmem:[#allocation2 + $0x20] sm:$0xf]
    %v103 = vld [vmem:[#allocation2 + $0x24] sm:$0xf]
    %v104 = vld [vmem:[#allocation2 + $0x28] sm:$0xf]
    %v105 = vld [vmem:[#allocation2 + $0x2c] sm:$0xf]
    %v106 = vld [vmem:[#allocation2 + $0x30] sm:$0xf]
    %v107 = vld [vmem:[#allocation2 + $0x34] sm:$0xf]
    %v108 = vld [vmem:[#allocation2 + $0x38] sm:$0xf]
    %v109 = vld [vmem:[#allocation2 + $0x3c] sm:$0xf]
    %v110 = vld [vmem:[%s4] sm:$0x1]
    %v111 = vpack.c.bf16 %v93, %v92
    %v113 = vperm.slane %v110, 0
    %v131 = vunpack.c.l.b16 %v94
    %v132 = vunpack.c.l.b16 %v95
    %v133 = vunpack.c.l.b16 %v96
    %v134 = vunpack.c.l.b16 %v97
    %v135 = vunpack.c.l.b16 %v98
    %v136 = vunpack.c.l.b16 %v99
    %v137 = vunpack.c.l.b16 %v100
    %v138 = vunpack.c.l.b16 %v101
    %v139 = vunpack.c.l.b16 %v102
    %v140 = vunpack.c.l.b16 %v103
    %v141 = vunpack.c.l.b16 %v104
    %v142 = vunpack.c.l.b16 %v105
    %v143 = vunpack.c.l.b16 %v106
    %v144 = vunpack.c.l.b16 %v107
    %v145 = vunpack.c.l.b16 %v108
    %v146 = vunpack.c.l.b16 %v109
    %v147 = vpack.c.b16 %v132, %v131
    %v148 = vpack.c.b16 %v134, %v133
    %v149 = vpack.c.b16 %v136, %v135
    %v150 = vpack.c.b16 %v138, %v137
    %v151 = vpack.c.b16 %v140, %v139
    %v152 = vpack.c.b16 %v142, %v141
    %v153 = vpack.c.b16 %v144, %v143
    %v154 = vpack.c.b16 %v146, %v145
    %163 = vmatpush.bf16.msra.mxu0 %v154
    %164 = vmatpush.bf16.msra.mxu0 %v153
    %165 = vmatpush.bf16.msra.mxu0 %v152
    %166 = vmatpush.bf16.msra.mxu0 %v151
    %167 = vmatpush.bf16.msra.mxu0 %v150
    %168 = vmatpush.bf16.msra.mxu0 %v149
    %169 = vmatpush.bf16.msra.mxu0 %v148
    %170 = vmatpush.bf16.msra.mxu0 %v147
    %171 = vmatmul.bf16.gmra.mxu0 %v111
    %v172 = vpop.f32.mrf.mxu0
    %v173 = vadd.f32 %v113, %v172
    %v174 = vpop.f32.mrf.mxu0
    %v175 = vadd.f32 %v113, %v174
    %176 = vdwg.mxu0
    %v177 = vmax.f32 %v173, 0.0
    %v178 = vmax.f32 %v175, 0.0
    %v179 = vld [vmem:[#allocation4] sm:$0xf]
    %v180 = vld [vmem:[#allocation4 + $0x4] sm:$0xf]
    %v181 = vld [vmem:[#allocation4 + $0x8] sm:$0xf]
    %v182 = vld [vmem:[#allocation4 + $0xc] sm:$0xf]
    %v183 = vld [vmem:[#allocation4 + $0x10] sm:$0xf]
    %v184 = vld [vmem:[#allocation4 + $0x14] sm:$0xf]
    %v185 = vld [vmem:[#allocation4 + $0x18] sm:$0xf]
    %v186 = vld [vmem:[#allocation4 + $0x1c] sm:$0xf]
    %v187 = vld [vmem:[#allocation4 + $0x20] sm:$0xf]
    %v188 = vld [vmem:[#allocation4 + $0x24] sm:$0xf]
    %v189 = vld [vmem:[#allocation4 + $0x28] sm:$0xf]
    %v190 = vld [vmem:[#allocation4 + $0x2c] sm:$0xf]
    %v191 = vld [vmem:[#allocation4 + $0x30] sm:$0xf]
    %v192 = vld [vmem:[#allocation4 + $0x34] sm:$0xf]
    %v193 = vld [vmem:[#allocation4 + $0x38] sm:$0xf]
    %v194 = vld [vmem:[#allocation4 + $0x3c] sm:$0xf]
    %v195 = vld [vmem:[%s6] sm:$0x1]
    %v196 = vpack.c.bf16 %v178, %v177
    %v198 = vperm.slane %v195, 0
    %v216 = vunpack.c.l.b16 %v179
    %v217 = vunpack.c.l.b16 %v180
    %v218 = vunpack.c.l.b16 %v181
    %v219 = vunpack.c.l.b16 %v182
    %v220 = vunpack.c.l.b16 %v183
    %v221 = vunpack.c.l.b16 %v184
    %v222 = vunpack.c.l.b16 %v185
    %v223 = vunpack.c.l.b16 %v186
    %v224 = vunpack.c.l.b16 %v187
    %v225 = vunpack.c.l.b16 %v188
    %v226 = vunpack.c.l.b16 %v189
    %v227 = vunpack.c.l.b16 %v190
    %v228 = vunpack.c.l.b16 %v191
    %v229 = vunpack.c.l.b16 %v192
    %v230 = vunpack.c.l.b16 %v193
    %v231 = vunpack.c.l.b16 %v194
    %v232 = vpack.c.b16 %v217, %v216
    %v233 = vpack.c.b16 %v219, %v218
    %v234 = vpack.c.b16 %v221, %v220
    %v235 = vpack.c.b16 %v223, %v222
    %v236 = vpack.c.b16 %v225, %v224
    %v237 = vpack.c.b16 %v227, %v226
    %v238 = vpack.c.b16 %v229, %v228
    %v239 = vpack.c.b16 %v231, %v230
    %248 = vmatpush.bf16.msra.mxu0 %v239
    %249 = vmatpush.bf16.msra.mxu0 %v238
    %250 = vmatpush.bf16.msra.mxu0 %v237
    %251 = vmatpush.bf16.msra.mxu0 %v236
    %252 = vmatpush.bf16.msra.mxu0 %v235
    %253 = vmatpush.bf16.msra.mxu0 %v234
    %254 = vmatpush.bf16.msra.mxu0 %v233
    %255 = vmatpush.bf16.msra.mxu0 %v232
    %256 = vmatmul.bf16.gmra.mxu0 %v196
    %v257 = vpop.f32.mrf.mxu0
    %v258 = vadd.f32 %v198, %v257
    %v259 = vpop.f32.mrf.mxu0
    %v260 = vadd.f32 %v198, %v259
    %261 = vdwg.mxu0
    %262 = vst [vmem:[%s7] sm:$0xff] %v258
    %263 = vst [vmem:[%s7 + $0x8] sm:$0xff] %v260
    // Predicated region
    $region38: #{fused_forward.1} parent=1 // pred_check
      _
    $region39: #{fused_forward.1} parent=1 // pred_check_branch
      %265 = sbr.rel (0) target = $region41
    $region40: #{fused_forward.1} parent=1 // pred_region
      _
    $region41: #{fused_forward.1} parent=1 // pred_fallthru
      _
    // Predicated region
    $region42: #{fused_forward.1} parent=1 // pred_check
      _
    $region43: #{fused_forward.1} parent=1 // pred_check_branch
      %267 = sbr.rel (0) target = $region45
    $region44: #{fused_forward.1} parent=1 // pred_region
      _
    $region45: #{fused_forward.1} parent=1 // pred_fallthru
      _
    %268 = vsyncpa [#allocation3], 1
    %269 = vsyncpa [#allocation5], 1

</llo_original>
